<compile_context>
chip_gen: v7x
topology: tpu7x:2x2x1
jax: 0.10.0
libtpu: 0.0.40
codegen_flags: <defaults>
</compile_context>

<pallas_src>
import jax
import jax.numpy as jnp
from jax.experimental import pallas as pl
from jax.experimental.pallas import tpu as pltpu


def mlp_kernel(x_ref, w1_ref, b1_ref, w2_ref, b2_ref, w3_ref, b3_ref, o_ref):
    # linear_1 + ReLU : (tm, 33) @ (33, 64) on the MXU, bf16 operands, f32 acc.
    x_bf = x_ref[...].astype(jnp.bfloat16)
    h1 = jnp.dot(x_bf, w1_ref[...], preferred_element_type=jnp.float32)
    h1 = jnp.maximum(h1 + b1_ref[...], 0.0)
    # linear_2 + ReLU : (tm, 64) @ (64, 64), bf16 operands, f32 acc.
    h2 = jnp.dot(h1.astype(jnp.bfloat16), w2_ref[...],
                 preferred_element_type=jnp.float32)
    h2 = jnp.maximum(h2 + b2_ref[...], 0.0)
    # Dropout(p=0.1): identity in eval/inference mode.
    # TODO(synk): training-mode dropout would need pltpu.prng_seed/prng_random_bits.
    # linear_3 : (tm, 64) @ (64, 1) on the MXU (N=1); (tm, 1) store, 4 B/row.
    out = jnp.dot(h2, w3_ref[...], preferred_element_type=jnp.float32)
    o_ref[...] = out + b3_ref[0, 0]


def _round_up(n, m):
    return ((n + m - 1) // m) * m


def network_forward(x, params, *, block_rows=8192):
    """x: (B, 33) f32.  Returns (B, 1) f32, matching the PyTorch eval forward."""
    w1, b1, w2, b2, w3, b3 = params
    B, f_in = x.shape
    H = w1.shape[1]            # 64

    # Batch tile: multiple of 256 (robust against odd block_rows), large enough
    # to amortize per-step overhead, capped so big batches keep >=4 grid steps.
    tm = min(block_rows, _round_up(pl.cdiv(B, 4), 256))
    tm = _round_up(max(tm, 256), 256)
    n_tiles = pl.cdiv(B, tm)   # last block may be partial; Pallas clips it.

    # Tiny weight prep (33x64 / 64x64): bf16 for the two MXU matmuls.
    w1_bf = w1.astype(jnp.bfloat16)
    w2_bf = w2.astype(jnp.bfloat16)
    b3_s = b3.reshape(1, 1)    # scalar, lives in SMEM

    flops = 2 * B * (f_in * H + H * H + H)
    bytes_accessed = (x.size + B) * 4 + (w1.size + w2.size) * 2 + (3 * H + 1) * 4
    cost = pl.CostEstimate(flops=flops, transcendentals=0,
                           bytes_accessed=bytes_accessed)

    const = lambda i: (0, 0)   # weights/biases stay VMEM-resident across steps
    out = pl.pallas_call(
        mlp_kernel,
        out_shape=jax.ShapeDtypeStruct((B, 1), jnp.float32),
        grid=(n_tiles,),
        in_specs=[
            pl.BlockSpec((tm, f_in), lambda i: (i, 0)),          # x (streamed)
            pl.BlockSpec((f_in, H), const),                      # w1 (bf16)
            pl.BlockSpec((1, H), const),                         # b1
            pl.BlockSpec((H, H), const),                         # w2 (bf16)
            pl.BlockSpec((1, H), const),                         # b2
            pl.BlockSpec((H, 1), const),                         # w3
            pl.BlockSpec(memory_space=pltpu.MemorySpace.SMEM),   # b3 scalar
        ],
        out_specs=pl.BlockSpec((tm, 1), lambda i: (i, 0)),
        compiler_params=pltpu.CompilerParams(
            dimension_semantics=("parallel",),
            vmem_limit_bytes=32 * 1024 * 1024),
        cost_estimate=cost,
    )(x, w1_bf, b1, w2_bf, b2, w3, b3_s)
    return out


def init_params(key):
    """Deterministic init mimicking PyTorch nn.Linear default (uniform +-1/sqrt(fan_in))."""
    def linear(key, fan_in, fan_out):
        kw, kb = jax.random.split(key)
        bound = 1.0 / jnp.sqrt(float(fan_in))
        # stored as (in, out) so the kernel does x @ W
        w = jax.random.uniform(kw, (fan_in, fan_out), jnp.float32, -bound, bound)
        b = jax.random.uniform(kb, (1, fan_out), jnp.float32, -bound, bound)
        return w, b

    k1, k2, k3 = jax.random.split(key, 3)
    w1, b1 = linear(k1, 33, 64)
    w2, b2 = linear(k2, 64, 64)
    w3, b3 = linear(k3, 64, 1)
    return (w1, b1, w2, b2, w3, b3)


if __name__ == "__main__":
    key = jax.random.PRNGKey(0)
    k_params, k_x = jax.random.split(key)

    params = init_params(k_params)
    B = 8  # small batch for the correctness check (partial-block path)
    x = jax.random.normal(k_x, (B, 33), jnp.float32)

    out = network_forward(x, params)
    out = jax.block_until_ready(out)

    # Reference in plain JAX following the same bf16-operand / f32-accumulate
    # path as the kernel (dropout = identity in eval mode).
    w1, b1, w2, b2, w3, b3 = params
    h = jnp.dot(x.astype(jnp.bfloat16), w1.astype(jnp.bfloat16),
                preferred_element_type=jnp.float32) + b1
    h = jnp.maximum(h, 0.0)
    h = jnp.dot(h.astype(jnp.bfloat16), w2.astype(jnp.bfloat16),
                preferred_element_type=jnp.float32) + b2
    h = jnp.maximum(h, 0.0)
    ref = jnp.dot(h, w3, preferred_element_type=jnp.float32) + b3

    assert out.shape == (B, 1)
    assert bool(jnp.all(jnp.isfinite(out)))
    assert jnp.allclose(out, ref, atol=1e-2, rtol=1e-2), (out, ref)

    print("KERNEL_OK")
</pallas_src>

<mosaic_0001>
module attributes {stable_mosaic.version = 11 : i64} {
  func.func @mlp_kernel(%arg0: i32, %arg1: memref<256x33xf32, #tpu.memory_space<vmem>>, %arg2: memref<33x64xbf16, #tpu.memory_space<vmem>>, %arg3: memref<1x64xf32, #tpu.memory_space<vmem>>, %arg4: memref<64x64xbf16, #tpu.memory_space<vmem>>, %arg5: memref<1x64xf32, #tpu.memory_space<vmem>>, %arg6: memref<64x1xf32, #tpu.memory_space<vmem>>, %arg7: memref<1x1xf32, #tpu.memory_space<smem>>, %arg8: memref<256x1xf32, #tpu.memory_space<vmem>>) attributes {dimension_semantics = [#tpu.dimension_semantics<parallel>], iteration_bounds = array<i64: 1>, scalar_prefetch = 0 : i64, scratch_operands = 0 : i64, tpu.core_type = #tpu.core_type<tc>, window_params = [{transform_indices = @transform_0, window_bounds = array<i64: 256, 33>}, {pipeline_mode = #tpu.pipeline_mode<synchronous>, transform_indices = @transform_1, window_bounds = array<i64: 33, 64>}, {pipeline_mode = #tpu.pipeline_mode<synchronous>, transform_indices = @transform_2, window_bounds = array<i64: 1, 64>}, {pipeline_mode = #tpu.pipeline_mode<synchronous>, transform_indices = @transform_3, window_bounds = array<i64: 64, 64>}, {pipeline_mode = #tpu.pipeline_mode<synchronous>, transform_indices = @transform_4, window_bounds = array<i64: 1, 64>}, {pipeline_mode = #tpu.pipeline_mode<synchronous>, transform_indices = @transform_5, window_bounds = array<i64: 64, 1>}, {transform_indices = @transform_6, window_bounds = array<i64: 1, 1>}, {transform_indices = @transform_7, window_bounds = array<i64: 256, 1>}]} {
    %c0 = arith.constant 0 : index
    %c0_0 = arith.constant 0 : index
    %0 = vector.load %arg1[%c0, %c0_0] : memref<256x33xf32, #tpu.memory_space<vmem>>, vector<256x33xf32>
    %1 = arith.truncf %0 : vector<256x33xf32> to vector<256x33xbf16>
    %c0_1 = arith.constant 0 : index
    %c0_2 = arith.constant 0 : index
    %2 = vector.load %arg2[%c0_1, %c0_2] : memref<33x64xbf16, #tpu.memory_space<vmem>>, vector<33x64xbf16>
    %cst = arith.constant dense<0.000000e+00> : vector<256x64xf32>
    %3 = tpu.matmul %1, %2, %cst {dimension_numbers = #tpu.dot_dimension_numbers<[1], [0], [0], [1], [0, 0, 1, 1], [], []>} : vector<256x33xbf16>, vector<33x64xbf16>, vector<256x64xf32> -> vector<256x64xf32>
    %c0_3 = arith.constant 0 : index
    %c0_4 = arith.constant 0 : index
    %4 = vector.load %arg3[%c0_3, %c0_4] : memref<1x64xf32, #tpu.memory_space<vmem>>, vector<1x64xf32>
    %5 = vector.broadcast %4 : vector<1x64xf32> to vector<256x64xf32>
    %6 = arith.addf %3, %5 : vector<256x64xf32>
    %cst_5 = arith.constant 0.000000e+00 : f32
    %7 = vector.broadcast %cst_5 : f32 to vector<256x64xf32>
    %8 = arith.maximumf %6, %7 : vector<256x64xf32>
    %9 = arith.truncf %8 : vector<256x64xf32> to vector<256x64xbf16>
    %c0_6 = arith.constant 0 : index
    %c0_7 = arith.constant 0 : index
    %10 = vector.load %arg4[%c0_6, %c0_7] : memref<64x64xbf16, #tpu.memory_space<vmem>>, vector<64x64xbf16>
    %cst_8 = arith.constant dense<0.000000e+00> : vector<256x64xf32>
    %11 = tpu.matmul %9, %10, %cst_8 {dimension_numbers = #tpu.dot_dimension_numbers<[1], [0], [0], [1], [0, 0, 1, 1], [], []>} : vector<256x64xbf16>, vector<64x64xbf16>, vector<256x64xf32> -> vector<256x64xf32>
    %c0_9 = arith.constant 0 : index
    %c0_10 = arith.constant 0 : index
    %12 = vector.load %arg5[%c0_9, %c0_10] : memref<1x64xf32, #tpu.memory_space<vmem>>, vector<1x64xf32>
    %13 = vector.broadcast %12 : vector<1x64xf32> to vector<256x64xf32>
    %14 = arith.addf %11, %13 : vector<256x64xf32>
    %cst_11 = arith.constant 0.000000e+00 : f32
    %15 = vector.broadcast %cst_11 : f32 to vector<256x64xf32>
    %16 = arith.maximumf %14, %15 : vector<256x64xf32>
    %c0_12 = arith.constant 0 : index
    %c0_13 = arith.constant 0 : index
    %17 = vector.load %arg6[%c0_12, %c0_13] : memref<64x1xf32, #tpu.memory_space<vmem>>, vector<64x1xf32>
    %cst_14 = arith.constant dense<0.000000e+00> : vector<256x1xf32>
    %18 = tpu.matmul %16, %17, %cst_14 {dimension_numbers = #tpu.dot_dimension_numbers<[1], [0], [0], [1], [0, 0, 1, 1], [], []>} : vector<256x64xf32>, vector<64x1xf32>, vector<256x1xf32> -> vector<256x1xf32>
    %c0_15 = arith.constant 0 : index
    %c0_16 = arith.constant 0 : index
    %19 = memref.load %arg7[%c0_15, %c0_16] : memref<1x1xf32, #tpu.memory_space<smem>>
    %20 = vector.broadcast %19 : f32 to vector<256x1xf32>
    %21 = arith.addf %18, %20 : vector<256x1xf32>
    %c0_17 = arith.constant 0 : index
    %c0_18 = arith.constant 0 : index
    %22 = vector.load %arg8[%c0_17, %c0_18] : memref<256x1xf32, #tpu.memory_space<vmem>>, vector<256x1xf32>
    tpu.vector_store %arg8[%c0_17, %c0_18], %21 {strides = array<i32>} : memref<256x1xf32, #tpu.memory_space<vmem>>, vector<256x1xf32>,
    return
  }
  func.func @transform_0(%arg0: i32) -> (i32, i32) {
    %c0_i32 = arith.constant 0 : i32
    %c0_i32_0 = arith.constant 0 : i32
    return %arg0, %c0_i32 : i32, i32
  }
  func.func @transform_1(%arg0: i32) -> (i32, i32) {
    %c0_i32 = arith.constant 0 : i32
    %c0_i32_0 = arith.constant 0 : i32
    %c0_i32_1 = arith.constant 0 : i32
    return %c0_i32, %c0_i32_0 : i32, i32
  }
  func.func @transform_2(%arg0: i32) -> (i32, i32) {
    %c0_i32 = arith.constant 0 : i32
    %c0_i32_0 = arith.constant 0 : i32
    %c0_i32_1 = arith.constant 0 : i32
    return %c0_i32, %c0_i32_0 : i32, i32
  }
  func.func @transform_3(%arg0: i32) -> (i32, i32) {
    %c0_i32 = arith.constant 0 : i32
    %c0_i32_0 = arith.constant 0 : i32
    %c0_i32_1 = arith.constant 0 : i32
    return %c0_i32, %c0_i32_0 : i32, i32
  }
  func.func @transform_4(%arg0: i32) -> (i32, i32) {
    %c0_i32 = arith.constant 0 : i32
    %c0_i32_0 = arith.constant 0 : i32
    %c0_i32_1 = arith.constant 0 : i32
    return %c0_i32, %c0_i32_0 : i32, i32
  }
  func.func @transform_5(%arg0: i32) -> (i32, i32) {
    %c0_i32 = arith.constant 0 : i32
    %c0_i32_0 = arith.constant 0 : i32
    %c0_i32_1 = arith.constant 0 : i32
    return %c0_i32, %c0_i32_0 : i32, i32
  }
  func.func @transform_6(%arg0: i32) -> (i32, i32) {
    %c0_i32 = arith.constant 0 : i32
    %c0_i32_0 = arith.constant 0 : i32
    %c0_i32_1 = arith.constant 0 : i32
    return %c0_i32, %c0_i32_0 : i32, i32
  }
  func.func @transform_7(%arg0: i32) -> (i32, i32) {
    %c0_i32 = arith.constant 0 : i32
    %c0_i32_0 = arith.constant 0 : i32
    return %arg0, %c0_i32 : i32, i32
  }
}

</mosaic_0001>

<llo_original>
// kernel: tpu_custom_call.1
$region0: #{tpu_custom_call.1}
  #allocation0 [shape = 'u32[]', space=smem, size = 0x4, offset = 0x4, fixed_abs, tag = 'smem constant byte address 0x4 - core index']
  #allocation1 [shape = 'u32[144,128]{1,0:T(1,128)}', space=vmem, size = 0x12000, scoped, tag = 'internal scratch']
  #allocation2 [shape = 'f32[1,1]{1,0:T(1,128)S(6)}', space=smem, size = 0x200, scoped, tag = 'scoped memory for tpu_custom_call.1']
  %s0 = inlined_call_operand.vmem [shape: f32[8,33], index: 0, kind: input, shape index: {}]
  %s1 = inlined_call_operand.vmem [shape: bf16[33,64], index: 1, kind: input, shape index: {}]
  %s2 = inlined_call_operand.vmem [shape: f32[1,64], index: 2, kind: input, shape index: {}]
  %s3 = inlined_call_operand.vmem [shape: bf16[64,64], index: 3, kind: input, shape index: {}]
  %s4 = inlined_call_operand.vmem [shape: f32[1,64], index: 4, kind: input, shape index: {}]
  %s5 = inlined_call_operand.vmem [shape: f32[64,1], index: 5, kind: input, shape index: {}]
  %s6 = inlined_call_operand.<no memory space> [shape: f32[1,1], index: 6, kind: input, shape index: {}]
  %s7 = inlined_call_operand.vmem [shape: f32[8,1], index: 7, kind: output, shape index: {}]
  %s8 = sld [smem:[#allocation0]]
  $region72: #{tpu_custom_call.1} parent=0
    _
  %s10 = ssub.s32 1, %s8
  %s11 = scalar_select 0, %s10, %s8
  %12 = sst [smem:[#allocation2]] %s6
  $region1: #{tpu_custom_call.1} parent=0
    #allocation3 [shape = 'u8[131072]{0}', space=vmem, size = 0x20000, scoped, tag = 'output window, operand 0, single buffered']
    // Predicated region
    $region2: #{tpu_custom_call.1} parent=1 // pred_check
      _
    $region3: #{tpu_custom_call.1} parent=1 // pred_check_branch
      %14 = sbr.rel (0) target = $region5
    $region4: #{tpu_custom_call.1} parent=1 // pred_region
      _
    $region5: #{tpu_custom_call.1} parent=1 // pred_fallthru
      _
    // Predicated region
    $region6: #{tpu_custom_call.1} parent=1 // pred_check
      _
    $region7: #{tpu_custom_call.1} parent=1 // pred_check_branch
      %16 = sbr.rel (0) target = $region9
    $region8: #{tpu_custom_call.1} parent=1 // pred_region
      _
    $region9: #{tpu_custom_call.1} parent=1 // pred_fallthru
      _
    // Predicated region
    $region10: #{tpu_custom_call.1} parent=1 // pred_check
      _
    $region11: #{tpu_custom_call.1} parent=1 // pred_check_branch
      %18 = sbr.rel (0) target = $region13
    $region12: #{tpu_custom_call.1} parent=1 // pred_region
      _
    $region13: #{tpu_custom_call.1} parent=1 // pred_fallthru
      _
    // Predicated region
    $region14: #{tpu_custom_call.1} parent=1 // pred_check
      _
    $region15: #{tpu_custom_call.1} parent=1 // pred_check_branch
      %20 = sbr.rel (0) target = $region17
    $region16: #{tpu_custom_call.1} parent=1 // pred_region
      _
    $region17: #{tpu_custom_call.1} parent=1 // pred_fallthru
      _
    // Predicated region
    $region18: #{tpu_custom_call.1} parent=1 // pred_check
      _
    $region19: #{tpu_custom_call.1} parent=1 // pred_check_branch
      %22 = sbr.rel (0) target = $region21
    $region20: #{tpu_custom_call.1} parent=1 // pred_region
      _
    $region21: #{tpu_custom_call.1} parent=1 // pred_fallthru
      _
    // Predicated region
    $region22: #{tpu_custom_call.1} parent=1 // pred_check
      _
    $region23: #{tpu_custom_call.1} parent=1 // pred_check_branch
      %24 = sbr.rel (0) target = $region25
    $region24: #{tpu_custom_call.1} parent=1 // pred_region
      _
    $region25: #{tpu_custom_call.1} parent=1 // pred_fallthru
      _
    // Predicated region
    $region26: #{tpu_custom_call.1} parent=1 // pred_check
      _
    $region27: #{tpu_custom_call.1} parent=1 // pred_check_branch
      %26 = sbr.rel (0) target = $region29
    $region28: #{tpu_custom_call.1} parent=1 // pred_region
      _
    $region29: #{tpu_custom_call.1} parent=1 // pred_fallthru
      _
    %v28 = vld [vmem:[%s0] sm:$0xff]
    %v29 = vld [vmem:[%s0 + $0x8] sm:$0xff]
    %v30 = vld [vmem:[%s0 + $0x10] sm:$0xff]
    %v31 = vld [vmem:[%s0 + $0x18] sm:$0xff]
    %v32 = vld [vmem:[%s0 + $0x20] sm:$0xff]
    %v33 = vld [vmem:[%s0 + $0x28] sm:$0xff]
    %v34 = vld [vmem:[%s0 + $0x30] sm:$0xff]
    %v35 = vld [vmem:[%s0 + $0x38] sm:$0xff]
    %v36 = vld [vmem:[%s0 + $0x40] sm:$0xff]
    %v37 = vld [vmem:[%s0 + $0x48] sm:$0xff]
    %v38 = vld [vmem:[%s0 + $0x50] sm:$0xff]
    %v39 = vld [vmem:[%s0 + $0x58] sm:$0xff]
    %v40 = vld [vmem:[%s0 + $0x60] sm:$0xff]
    %v41 = vld [vmem:[%s0 + $0x68] sm:$0xff]
    %v42 = vld [vmem:[%s0 + $0x70] sm:$0xff]
    %v43 = vld [vmem:[%s0 + $0x78] sm:$0xff]
    %v44 = vld [vmem:[%s0 + $0x80] sm:$0xff]
    %v45 = vld [vmem:[%s0 + $0x88] sm:$0xff]
    %v46 = vld [vmem:[%s0 + $0x90] sm:$0xff]
    %v47 = vld [vmem:[%s0 + $0x98] sm:$0xff]
    %v48 = vld [vmem:[%s0 + $0xa0] sm:$0xff]
    %v49 = vld [vmem:[%s0 + $0xa8] sm:$0xff]
    %v50 = vld [vmem:[%s0 + $0xb0] sm:$0xff]
    %v51 = vld [vmem:[%s0 + $0xb8] sm:$0xff]
    %v52 = vld [vmem:[%s0 + $0xc0] sm:$0xff]
    %v53 = vld [vmem:[%s0 + $0xc8] sm:$0xff]
    %v54 = vld [vmem:[%s0 + $0xd0] sm:$0xff]
    %v55 = vld [vmem:[%s0 + $0xd8] sm:$0xff]
    %v56 = vld [vmem:[%s0 + $0xe0] sm:$0xff]
    %v57 = vld [vmem:[%s0 + $0xe8] sm:$0xff]
    %v58 = vld [vmem:[%s0 + $0xf0] sm:$0xff]
    %v59 = vld [vmem:[%s0 + $0xf8] sm:$0xff]
    %v60 = vpack.c.bf16 %v29, %v28
    %v61 = vpack.c.bf16 %v31, %v30
    %v62 = vpack.c.bf16 %v33, %v32
    %v63 = vpack.c.bf16 %v35, %v34
    %v64 = vpack.c.bf16 %v37, %v36
    %v65 = vpack.c.bf16 %v39, %v38
    %v66 = vpack.c.bf16 %v41, %v40
    %v67 = vpack.c.bf16 %v43, %v42
    %v68 = vpack.c.bf16 %v45, %v44
    %v69 = vpack.c.bf16 %v47, %v46
    %v70 = vpack.c.bf16 %v49, %v48
    %v71 = vpack.c.bf16 %v51, %v50
    %v72 = vpack.c.bf16 %v53, %v52
    %v73 = vpack.c.bf16 %v55, %v54
    %v74 = vpack.c.bf16 %v57, %v56
    %v75 = vpack.c.bf16 %v59, %v58
    %v76 = vld [vmem:[%s1] sm:$0xf]
    %v77 = vld [vmem:[%s1 + $0x4] sm:$0xf]
    %v78 = vld [vmem:[%s1 + $0x8] sm:$0xf]
    %v79 = vld [vmem:[%s1 + $0xc] sm:$0xf]
    %v80 = vld [vmem:[%s1 + $0x10] sm:$0x1]
    %v81 = vld [vmem:[%s2] sm:$0x1]
    %v83 = vlaneseq
    %v84 = vshrl.u32 %v83, 7
    %v85 = vsub.s32 0, %v84
    %v86 = vrot.slane %v81, %v85
    %v93 = vunpack.c.l.b16 %v76
    %v94 = vunpack.c.l.b16 %v77
    %v95 = vunpack.c.l.b16 %v78
    %v96 = vunpack.c.l.b16 %v79
    %v97 = vunpack.c.l.b16 %v80
    %v98 = vpack.c.b16 %v94, %v93
    %v99 = vpack.c.b16 %v96, %v95
    %v100 = vpack.c.b16 %v97, %v97
    %vm103 = vcmask 269312
    %v105 = vsel %vm103, %v60, 0
    %v108 = vsel %vm103, %v61, 0
    %v111 = vsel %vm103, %v62, 0
    %v114 = vsel %vm103, %v63, 0
    %v117 = vsel %vm103, %v64, 0
    %v120 = vsel %vm103, %v65, 0
    %v123 = vsel %vm103, %v66, 0
    %v126 = vsel %vm103, %v67, 0
    %v129 = vsel %vm103, %v68, 0
    %v132 = vsel %vm103, %v69, 0
    %v135 = vsel %vm103, %v70, 0
    %v138 = vsel %vm103, %v71, 0
    %v141 = vsel %vm103, %v72, 0
    %v144 = vsel %vm103, %v73, 0
    %v147 = vsel %vm103, %v74, 0
    %v150 = vsel %vm103, %v75, 0
    %vm152 = vcmask 1040384
    %v153 = vsel 0, 4294967295, 65535
    %v154 = vsel %vm152, %v153, 0
    %v156 = vand.u32 %v100, %v154
    %158 = vmatprep.subr.bf16.mxu0 0
    %159 = vmatpush1.bf16.msra.mxu0 %v98
    %160 = vmatprep.subr.bf16.mxu0 0
    %161 = vmatpush1.bf16.msra.mxu0 %v99
    %162 = vmatprep.subr.bf16.mxu0 0
    %163 = vmatpush1.bf16.msra.mxu0 %v156
    %164 = vmatprep.subr.bf16.mxu0 0
    %165 = vmatpush1.bf16.msra.mxu0 0
    %166 = vmatprep.subr.bf16.mxu0 0
    %167 = vmatpush1.bf16.msra.mxu0 0
    %168 = vmatprep.subr.bf16.mxu0 0
    %169 = vmatpush1.bf16.msra.mxu0 0
    %170 = vmatprep.subr.bf16.mxu0 0
    %171 = vmatpush1.bf16.msra.mxu0 0
    %172 = vmatprep.subr.bf16.mxu0 0
    %173 = vmatpush1.bf16.msra.mxu0 0
    %174 = vmatprep.subr.bf16.mxu0 0
    %175 = vmatpush1.bf16.msra.mxu0 0
    %176 = vmatprep.subr.bf16.mxu0 0
    %177 = vmatpush1.bf16.msra.mxu0 0
    %178 = vmatprep.subr.bf16.mxu0 0
    %179 = vmatpush1.bf16.msra.mxu0 0
    %180 = vmatprep.subr.bf16.mxu0 0
    %181 = vmatpush1.bf16.msra.mxu0 0
    %182 = vmatprep.subr.bf16.mxu0 0
    %183 = vmatpush1.bf16.msra.mxu0 0
    %184 = vmatprep.subr.bf16.mxu0 0
    %185 = vmatpush1.bf16.msra.mxu0 0
    %186 = vmatprep.subr.bf16.mxu0 0
    %187 = vmatpush1.bf16.msra.mxu0 0
    %188 = vmatprep.subr.bf16.mxu0 0
    %189 = vmatpush1.bf16.msra.mxu0 0
    %190 = vmatprep.mubr.bf16.mxu0 0
    %191 = vmatmul.mubr.bf16.gmra.mrb[0].mxu0 %v105
    %v192 = vpop.f32.mrb[0].mxu0
    %v193 = vadd.f32 %v86, %v192
    %v194 = vpop.f32.mrb[0].mxu0
    %v195 = vpop.f32.mrb[0].mxu0
    %v196 = vadd.f32 %v86, %v195
    %v197 = vpop.f32.mrb[0].mxu0
    %198 = vmatprep.mubr.bf16.mxu0 0
    %199 = vmatmul.mubr.bf16.gmra.mrb[0].mxu0 %v108
    %v200 = vpop.f32.mrb[0].mxu0
    %v201 = vadd.f32 %v86, %v200
    %v202 = vpop.f32.mrb[0].mxu0
    %v203 = vpop.f32.mrb[0].mxu0
    %v204 = vadd.f32 %v86, %v203
    %v205 = vpop.f32.mrb[0].mxu0
    %206 = vmatprep.mubr.bf16.mxu0 0
    %207 = vmatmul.mubr.bf16.gmra.mrb[0].mxu0 %v111
    %v208 = vpop.f32.mrb[0].mxu0
    %v209 = vadd.f32 %v86, %v208
    %v210 = vpop.f32.mrb[0].mxu0
    %v211 = vpop.f32.mrb[0].mxu0
    %v212 = vadd.f32 %v86, %v211
    %v213 = vpop.f32.mrb[0].mxu0
    %214 = vmatprep.mubr.bf16.mxu0 0
    %215 = vmatmul.mubr.bf16.gmra.mrb[0].mxu0 %v114
    %v216 = vpop.f32.mrb[0].mxu0
    %v217 = vadd.f32 %v86, %v216
    %v218 = vpop.f32.mrb[0].mxu0
    %v219 = vpop.f32.mrb[0].mxu0
    %v220 = vadd.f32 %v86, %v219
    %v221 = vpop.f32.mrb[0].mxu0
    %222 = vmatprep.mubr.bf16.mxu0 0
    %223 = vmatmul.mubr.bf16.gmra.mrb[0].mxu0 %v117
    %v224 = vpop.f32.mrb[0].mxu0
    %v225 = vadd.f32 %v86, %v224
    %v226 = vpop.f32.mrb[0].mxu0
    %v227 = vpop.f32.mrb[0].mxu0
    %v228 = vadd.f32 %v86, %v227
    %v229 = vpop.f32.mrb[0].mxu0
    %230 = vmatprep.mubr.bf16.mxu0 0
    %231 = vmatmul.mubr.bf16.gmra.mrb[0].mxu0 %v120
    %v232 = vpop.f32.mrb[0].mxu0
    %v233 = vadd.f32 %v86, %v232
    %v234 = vpop.f32.mrb[0].mxu0
    %v235 = vpop.f32.mrb[0].mxu0
    %v236 = vadd.f32 %v86, %v235
    %v237 = vpop.f32.mrb[0].mxu0
    %238 = vmatprep.mubr.bf16.mxu0 0
    %239 = vmatmul.mubr.bf16.gmra.mrb[0].mxu0 %v123
    %v240 = vpop.f32.mrb[0].mxu0
    %v241 = vadd.f32 %v86, %v240
    %v242 = vpop.f32.mrb[0].mxu0
    %v243 = vpop.f32.mrb[0].mxu0
    %v244 = vadd.f32 %v86, %v243
    %v245 = vpop.f32.mrb[0].mxu0
    %246 = vmatprep.mubr.bf16.mxu0 0
    %247 = vmatmul.mubr.bf16.gmra.mrb[0].mxu0 %v126
    %v248 = vpop.f32.mrb[0].mxu0
    %v249 = vadd.f32 %v86, %v248
    %v250 = vpop.f32.mrb[0].mxu0
    %v251 = vpop.f32.mrb[0].mxu0
    %v252 = vadd.f32 %v86, %v251
    %v253 = vpop.f32.mrb[0].mxu0
    %254 = vmatprep.mubr.bf16.mxu0 0
    %255 = vmatmul.mubr.bf16.gmra.mrb[0].mxu0 %v129
    %v256 = vpop.f32.mrb[0].mxu0
    %v257 = vadd.f32 %v86, %v256
    %v258 = vpop.f32.mrb[0].mxu0
    %v259 = vpop.f32.mrb[0].mxu0
    %v260 = vadd.f32 %v86, %v259
    %v261 = vpop.f32.mrb[0].mxu0
    %262 = vmatprep.mubr.bf16.mxu0 0
    %263 = vmatmul.mubr.bf16.gmra.mrb[0].mxu0 %v132
    %v264 = vpop.f32.mrb[0].mxu0
    %v265 = vadd.f32 %v86, %v264
    %v266 = vpop.f32.mrb[0].mxu0
    %v267 = vpop.f32.mrb[0].mxu0
    %v268 = vadd.f32 %v86, %v267
    %v269 = vpop.f32.mrb[0].mxu0
    %270 = vmatprep.mubr.bf16.mxu0 0
    %271 = vmatmul.mubr.bf16.gmra.mrb[0].mxu0 %v135
    %v272 = vpop.f32.mrb[0].mxu0
    %v273 = vadd.f32 %v86, %v272
    %v274 = vpop.f32.mrb[0].mxu0
    %v275 = vpop.f32.mrb[0].mxu0
    %v276 = vadd.f32 %v86, %v275
    %v277 = vpop.f32.mrb[0].mxu0
    %278 = vmatprep.mubr.bf16.mxu0 0
    %279 = vmatmul.mubr.bf16.gmra.mrb[0].mxu0 %v138
    %v280 = vpop.f32.mrb[0].mxu0
    %v281 = vadd.f32 %v86, %v280
    %v282 = vpop.f32.mrb[0].mxu0
    %v283 = vpop.f32.mrb[0].mxu0
    %v284 = vadd.f32 %v86, %v283
    %v285 = vpop.f32.mrb[0].mxu0
    %286 = vmatprep.mubr.bf16.mxu0 0
    %287 = vmatmul.mubr.bf16.gmra.mrb[0].mxu0 %v141
    %v288 = vpop.f32.mrb[0].mxu0
    %v289 = vadd.f32 %v86, %v288
    %v290 = vpop.f32.mrb[0].mxu0
    %v291 = vpop.f32.mrb[0].mxu0
    %v292 = vadd.f32 %v86, %v291
    %v293 = vpop.f32.mrb[0].mxu0
    %294 = vmatprep.mubr.bf16.mxu0 0
    %295 = vmatmul.mubr.bf16.gmra.mrb[0].mxu0 %v144
    %v296 = vpop.f32.mrb[0].mxu0
    %v297 = vadd.f32 %v86, %v296
    %v298 = vpop.f32.mrb[0].mxu0
    %v299 = vpop.f32.mrb[0].mxu0
    %v300 = vadd.f32 %v86, %v299
    %v301 = vpop.f32.mrb[0].mxu0
    %302 = vmatprep.mubr.bf16.mxu0 0
    %303 = vmatmul.mubr.bf16.gmra.mrb[0].mxu0 %v147
    %v304 = vpop.f32.mrb[0].mxu0
    %v305 = vadd.f32 %v86, %v304
    %v306 = vpop.f32.mrb[0].mxu0
    %v307 = vpop.f32.mrb[0].mxu0
    %v308 = vadd.f32 %v86, %v307
    %v309 = vpop.f32.mrb[0].mxu0
    %310 = vmatprep.mubr.bf16.mxu0 0
    %311 = vmatmul.mubr.bf16.gmra.mrb[0].mxu0 %v150
    %v312 = vpop.f32.mrb[0].mxu0
    %v313 = vadd.f32 %v86, %v312
    %v314 = vpop.f32.mrb[0].mxu0
    %v315 = vpop.f32.mrb[0].mxu0
    %v316 = vadd.f32 %v86, %v315
    %v317 = vpop.f32.mrb[0].mxu0
    %318 = vdwg.mxu0
    %v319 = vmax.f32 %v193, 0.0
    %v320 = vmax.f32 %v196, 0.0
    %v321 = vmax.f32 %v201, 0.0
    %v322 = vmax.f32 %v204, 0.0
    %v323 = vmax.f32 %v209, 0.0
    %v324 = vmax.f32 %v212, 0.0
    %v325 = vmax.f32 %v217, 0.0
    %v326 = vmax.f32 %v220, 0.0
    %v327 = vmax.f32 %v225, 0.0
    %v328 = vmax.f32 %v228, 0.0
    %v329 = vmax.f32 %v233, 0.0
    %v330 = vmax.f32 %v236, 0.0
    %v331 = vmax.f32 %v241, 0.0
    %v332 = vmax.f32 %v244, 0.0
    %v333 = vmax.f32 %v249, 0.0
    %v334 = vmax.f32 %v252, 0.0
    %v335 = vmax.f32 %v257, 0.0
    %v336 = vmax.f32 %v260, 0.0
    %v337 = vmax.f32 %v265, 0.0
    %v338 = vmax.f32 %v268, 0.0
    %v339 = vmax.f32 %v273, 0.0
    %v340 = vmax.f32 %v276, 0.0
    %v341 = vmax.f32 %v281, 0.0
    %v342 = vmax.f32 %v284, 0.0
    %v343 = vmax.f32 %v289, 0.0
    %v344 = vmax.f32 %v292, 0.0
    %v345 = vmax.f32 %v297, 0.0
    %v346 = vmax.f32 %v300, 0.0
    %v347 = vmax.f32 %v305, 0.0
    %v348 = vmax.f32 %v308, 0.0
    %v349 = vmax.f32 %v313, 0.0
    %v350 = vmax.f32 %v316, 0.0
    %v351 = vpack.c.bf16 %v320, %v319
    %v352 = vpack.c.bf16 %v322, %v321
    %v353 = vpack.c.bf16 %v324, %v323
    %v354 = vpack.c.bf16 %v326, %v325
    %v355 = vpack.c.bf16 %v328, %v327
    %v356 = vpack.c.bf16 %v330, %v329
    %v357 = vpack.c.bf16 %v332, %v331
    %v358 = vpack.c.bf16 %v334, %v333
    %v359 = vpack.c.bf16 %v336, %v335
    %v360 = vpack.c.bf16 %v338, %v337
    %v361 = vpack.c.bf16 %v340, %v339
    %v362 = vpack.c.bf16 %v342, %v341
    %v363 = vpack.c.bf16 %v344, %v343
    %v364 = vpack.c.bf16 %v346, %v345
    %v365 = vpack.c.bf16 %v348, %v347
    %v366 = vpack.c.bf16 %v350, %v349
    %v367 = vld [vmem:[%s3] sm:$0xf]
    %v368 = vld [vmem:[%s3 + $0x4] sm:$0xf]
    %v369 = vld [vmem:[%s3 + $0x8] sm:$0xf]
    %v370 = vld [vmem:[%s3 + $0xc] sm:$0xf]
    %v371 = vld [vmem:[%s3 + $0x10] sm:$0xf]
    %v372 = vld [vmem:[%s3 + $0x14] sm:$0xf]
    %v373 = vld [vmem:[%s3 + $0x18] sm:$0xf]
    %v374 = vld [vmem:[%s3 + $0x1c] sm:$0xf]
    %v375 = vld [vmem:[%s4] sm:$0x1]
    %v377 = vlaneseq
    %v378 = vshrl.u32 %v377, 7
    %v379 = vsub.s32 0, %v378
    %v380 = vrot.slane %v375, %v379
    %v390 = vunpack.c.l.b16 %v367
    %v391 = vunpack.c.l.b16 %v368
    %v392 = vunpack.c.l.b16 %v369
    %v393 = vunpack.c.l.b16 %v370
    %v394 = vunpack.c.l.b16 %v371
    %v395 = vunpack.c.l.b16 %v372
    %v396 = vunpack.c.l.b16 %v373
    %v397 = vunpack.c.l.b16 %v374
    %v398 = vpack.c.b16 %v391, %v390
    %v399 = vpack.c.b16 %v393, %v392
    %v400 = vpack.c.b16 %v395, %v394
    %v401 = vpack.c.b16 %v397, %v396
    %vm406 = vcmask 523264
    %v408 = vsel %vm406, %v351, 0
    %v411 = vsel %vm406, %v352, 0
    %v414 = vsel %vm406, %v353, 0
    %v417 = vsel %vm406, %v354, 0
    %v420 = vsel %vm406, %v355, 0
    %v423 = vsel %vm406, %v356, 0
    %v426 = vsel %vm406, %v357, 0
    %v429 = vsel %vm406, %v358, 0
    %v432 = vsel %vm406, %v359, 0
    %v435 = vsel %vm406, %v360, 0
    %v438 = vsel %vm406, %v361, 0
    %v441 = vsel %vm406, %v362, 0
    %v444 = vsel %vm406, %v363, 0
    %v447 = vsel %vm406, %v364, 0
    %v450 = vsel %vm406, %v365, 0
    %v453 = vsel %vm406, %v366, 0
    %455 = vmatprep.subr.bf16.mxu0 0
    %456 = vmatpush1.bf16.msra.mxu0 %v398
    %457 = vmatprep.subr.bf16.mxu0 0
    %458 = vmatpush1.bf16.msra.mxu0 %v399
    %459 = vmatprep.subr.bf16.mxu0 0
    %460 = vmatpush1.bf16.msra.mxu0 %v400
    %461 = vmatprep.subr.bf16.mxu0 0
    %462 = vmatpush1.bf16.msra.mxu0 %v401
    %463 = vmatprep.subr.bf16.mxu0 0
    %464 = vmatpush1.bf16.msra.mxu0 0
    %465 = vmatprep.subr.bf16.mxu0 0
    %466 = vmatpush1.bf16.msra.mxu0 0
    %467 = vmatprep.subr.bf16.mxu0 0
    %468 = vmatpush1.bf16.msra.mxu0 0
    %469 = vmatprep.subr.bf16.mxu0 0
    %470 = vmatpush1.bf16.msra.mxu0 0
    %471 = vmatprep.subr.bf16.mxu0 0
    %472 = vmatpush1.bf16.msra.mxu0 0
    %473 = vmatprep.subr.bf16.mxu0 0
    %474 = vmatpush1.bf16.msra.mxu0 0
    %475 = vmatprep.subr.bf16.mxu0 0
    %476 = vmatpush1.bf16.msra.mxu0 0
    %477 = vmatprep.subr.bf16.mxu0 0
    %478 = vmatpush1.bf16.msra.mxu0 0
    %479 = vmatprep.subr.bf16.mxu0 0
    %480 = vmatpush1.bf16.msra.mxu0 0
    %481 = vmatprep.subr.bf16.mxu0 0
    %482 = vmatpush1.bf16.msra.mxu0 0
    %483 = vmatprep.subr.bf16.mxu0 0
    %484 = vmatpush1.bf16.msra.mxu0 0
    %485 = vmatprep.subr.bf16.mxu0 0
    %486 = vmatpush1.bf16.msra.mxu0 0
    %487 = vmatprep.mubr.bf16.mxu0 0
    %488 = vmatmul.mubr.bf16.gmra.mrb[0].mxu0 %v408
    %v489 = vpop.f32.mrb[0].mxu0
    %v490 = vadd.f32 %v380, %v489
    %v491 = vpop.f32.mrb[0].mxu0
    %v492 = vpop.f32.mrb[0].mxu0
    %v493 = vadd.f32 %v380, %v492
    %v494 = vpop.f32.mrb[0].mxu0
    %495 = vmatprep.mubr.bf16.mxu0 0
    %496 = vmatmul.mubr.bf16.gmra.mrb[0].mxu0 %v411
    %v497 = vpop.f32.mrb[0].mxu0
    %v498 = vadd.f32 %v380, %v497
    %v499 = vpop.f32.mrb[0].mxu0
    %v500 = vpop.f32.mrb[0].mxu0
    %v501 = vadd.f32 %v380, %v500
    %v502 = vpop.f32.mrb[0].mxu0
    %503 = vmatprep.mubr.bf16.mxu0 0
    %504 = vmatmul.mubr.bf16.gmra.mrb[0].mxu0 %v414
    %v505 = vpop.f32.mrb[0].mxu0
    %v506 = vadd.f32 %v380, %v505
    %v507 = vpop.f32.mrb[0].mxu0
    %v508 = vpop.f32.mrb[0].mxu0
    %v509 = vadd.f32 %v380, %v508
    %v510 = vpop.f32.mrb[0].mxu0
    %511 = vmatprep.mubr.bf16.mxu0 0
    %512 = vmatmul.mubr.bf16.gmra.mrb[0].mxu0 %v417
    %v513 = vpop.f32.mrb[0].mxu0
    %v514 = vadd.f32 %v380, %v513
    %v515 = vpop.f32.mrb[0].mxu0
    %v516 = vpop.f32.mrb[0].mxu0
    %v517 = vadd.f32 %v380, %v516
    %v518 = vpop.f32.mrb[0].mxu0
    %519 = vmatprep.mubr.bf16.mxu0 0
    %520 = vmatmul.mubr.bf16.gmra.mrb[0].mxu0 %v420
    %v521 = vpop.f32.mrb[0].mxu0
    %v522 = vadd.f32 %v380, %v521
    %v523 = vpop.f32.mrb[0].mxu0
    %v524 = vpop.f32.mrb[0].mxu0
    %v525 = vadd.f32 %v380, %v524
    %v526 = vpop.f32.mrb[0].mxu0
    %527 = vmatprep.mubr.bf16.mxu0 0
    %528 = vmatmul.mubr.bf16.gmra.mrb[0].mxu0 %v423
    %v529 = vpop.f32.mrb[0].mxu0
    %v530 = vadd.f32 %v380, %v529
    %v531 = vpop.f32.mrb[0].mxu0
    %v532 = vpop.f32.mrb[0].mxu0
    %v533 = vadd.f32 %v380, %v532
    %v534 = vpop.f32.mrb[0].mxu0
    %535 = vmatprep.mubr.bf16.mxu0 0
    %536 = vmatmul.mubr.bf16.gmra.mrb[0].mxu0 %v426
    %v537 = vpop.f32.mrb[0].mxu0
    %v538 = vadd.f32 %v380, %v537
    %v539 = vpop.f32.mrb[0].mxu0
    %v540 = vpop.f32.mrb[0].mxu0
    %v541 = vadd.f32 %v380, %v540
    %v542 = vpop.f32.mrb[0].mxu0
    %543 = vmatprep.mubr.bf16.mxu0 0
    %544 = vmatmul.mubr.bf16.gmra.mrb[0].mxu0 %v429
    %v545 = vpop.f32.mrb[0].mxu0
    %v546 = vadd.f32 %v380, %v545
    %v547 = vpop.f32.mrb[0].mxu0
    %v548 = vpop.f32.mrb[0].mxu0
    %v549 = vadd.f32 %v380, %v548
    %v550 = vpop.f32.mrb[0].mxu0
    %551 = vmatprep.mubr.bf16.mxu0 0
    %552 = vmatmul.mubr.bf16.gmra.mrb[0].mxu0 %v432
    %v553 = vpop.f32.mrb[0].mxu0
    %v554 = vadd.f32 %v380, %v553
    %v555 = vpop.f32.mrb[0].mxu0
    %v556 = vpop.f32.mrb[0].mxu0
    %v557 = vadd.f32 %v380, %v556
    %v558 = vpop.f32.mrb[0].mxu0
    %559 = vmatprep.mubr.bf16.mxu0 0
    %560 = vmatmul.mubr.bf16.gmra.mrb[0].mxu0 %v435
    %v561 = vpop.f32.mrb[0].mxu0
    %v562 = vadd.f32 %v380, %v561
    %v563 = vpop.f32.mrb[0].mxu0
    %v564 = vpop.f32.mrb[0].mxu0
    %v565 = vadd.f32 %v380, %v564
    %v566 = vpop.f32.mrb[0].mxu0
    %567 = vmatprep.mubr.bf16.mxu0 0
    %568 = vmatmul.mubr.bf16.gmra.mrb[0].mxu0 %v438
    %v569 = vpop.f32.mrb[0].mxu0
    %v570 = vadd.f32 %v380, %v569
    %v571 = vpop.f32.mrb[0].mxu0
    %v572 = vpop.f32.mrb[0].mxu0
    %v573 = vadd.f32 %v380, %v572
    %v574 = vpop.f32.mrb[0].mxu0
    %575 = vmatprep.mubr.bf16.mxu0 0
    %576 = vmatmul.mubr.bf16.gmra.mrb[0].mxu0 %v441
    %v577 = vpop.f32.mrb[0].mxu0
    %v578 = vadd.f32 %v380, %v577
    %v579 = vpop.f32.mrb[0].mxu0
    %v580 = vpop.f32.mrb[0].mxu0
    %v581 = vadd.f32 %v380, %v580
    %v582 = vpop.f32.mrb[0].mxu0
    %583 = vmatprep.mubr.bf16.mxu0 0
    %584 = vmatmul.mubr.bf16.gmra.mrb[0].mxu0 %v444
    %v585 = vpop.f32.mrb[0].mxu0
    %v586 = vadd.f32 %v380, %v585
    %v587 = vpop.f32.mrb[0].mxu0
    %v588 = vpop.f32.mrb[0].mxu0
    %v589 = vadd.f32 %v380, %v588
    %v590 = vpop.f32.mrb[0].mxu0
    %591 = vmatprep.mubr.bf16.mxu0 0
    %592 = vmatmul.mubr.bf16.gmra.mrb[0].mxu0 %v447
    %v593 = vpop.f32.mrb[0].mxu0
    %v594 = vadd.f32 %v380, %v593
    %v595 = vpop.f32.mrb[0].mxu0
    %v596 = vpop.f32.mrb[0].mxu0
    %v597 = vadd.f32 %v380, %v596
    %v598 = vpop.f32.mrb[0].mxu0
    %599 = vmatprep.mubr.bf16.mxu0 0
    %600 = vmatmul.mubr.bf16.gmra.mrb[0].mxu0 %v450
    %v601 = vpop.f32.mrb[0].mxu0
    %v602 = vadd.f32 %v380, %v601
    %v603 = vpop.f32.mrb[0].mxu0
    %v604 = vpop.f32.mrb[0].mxu0
    %v605 = vadd.f32 %v380, %v604
    %v606 = vpop.f32.mrb[0].mxu0
    %607 = vmatprep.mubr.bf16.mxu0 0
    %608 = vmatmul.mubr.bf16.gmra.mrb[0].mxu0 %v453
    %v609 = vpop.f32.mrb[0].mxu0
    %v610 = vadd.f32 %v380, %v609
    %v611 = vpop.f32.mrb[0].mxu0
    %v612 = vpop.f32.mrb[0].mxu0
    %v613 = vadd.f32 %v380, %v612
    %v614 = vpop.f32.mrb[0].mxu0
    %615 = vdwg.mxu0
    %v616 = vmax.f32 %v490, 0.0
    %v617 = vmax.f32 %v493, 0.0
    %v618 = vmax.f32 %v498, 0.0
    %v619 = vmax.f32 %v501, 0.0
    %v620 = vmax.f32 %v506, 0.0
    %v621 = vmax.f32 %v509, 0.0
    %v622 = vmax.f32 %v514, 0.0
    %v623 = vmax.f32 %v517, 0.0
    %v624 = vmax.f32 %v522, 0.0
    %v625 = vmax.f32 %v525, 0.0
    %v626 = vmax.f32 %v530, 0.0
    %v627 = vmax.f32 %v533, 0.0
    %v628 = vmax.f32 %v538, 0.0
    %v629 = vmax.f32 %v541, 0.0
    %v630 = vmax.f32 %v546, 0.0
    %v631 = vmax.f32 %v549, 0.0
    %v632 = vmax.f32 %v554, 0.0
    %v633 = vmax.f32 %v557, 0.0
    %v634 = vmax.f32 %v562, 0.0
    %v635 = vmax.f32 %v565, 0.0
    %v636 = vmax.f32 %v570, 0.0
    %v637 = vmax.f32 %v573, 0.0
    %v638 = vmax.f32 %v578, 0.0
    %v639 = vmax.f32 %v581, 0.0
    %v640 = vmax.f32 %v586, 0.0
    %v641 = vmax.f32 %v589, 0.0
    %v642 = vmax.f32 %v594, 0.0
    %v643 = vmax.f32 %v597, 0.0
    %v644 = vmax.f32 %v602, 0.0
    %v645 = vmax.f32 %v605, 0.0
    %v646 = vmax.f32 %v610, 0.0
    %v647 = vmax.f32 %v613, 0.0
    %v648 = vld [vmem:[%s5] sm:$0xff]
    %v649 = vld [vmem:[%s5 + $0x8] sm:$0xff]
    %v650 = vld [vmem:[%s5 + $0x10] sm:$0xff]
    %v651 = vld [vmem:[%s5 + $0x18] sm:$0xff]
    %v652 = vld [vmem:[%s5 + $0x20] sm:$0xff]
    %v653 = vld [vmem:[%s5 + $0x28] sm:$0xff]
    %v654 = vld [vmem:[%s5 + $0x30] sm:$0xff]
    %v655 = vld [vmem:[%s5 + $0x38] sm:$0xff]
    %s656 = sld [smem:[#allocation2]]
    %v657 = vstv %s656
    %v659 = vsel %vm406, %v616, 0
    %v662 = vsel %vm406, %v617, 0
    %v665 = vsel %vm406, %v618, 0
    %v668 = vsel %vm406, %v619, 0
    %v671 = vsel %vm406, %v620, 0
    %v674 = vsel %vm406, %v621, 0
    %v677 = vsel %vm406, %v622, 0
    %v680 = vsel %vm406, %v623, 0
    %v683 = vsel %vm406, %v624, 0
    %v686 = vsel %vm406, %v625, 0
    %v689 = vsel %vm406, %v626, 0
    %v692 = vsel %vm406, %v627, 0
    %v695 = vsel %vm406, %v628, 0
    %v698 = vsel %vm406, %v629, 0
    %v701 = vsel %vm406, %v630, 0
    %v704 = vsel %vm406, %v631, 0
    %v707 = vsel %vm406, %v632, 0
    %v710 = vsel %vm406, %v633, 0
    %v713 = vsel %vm406, %v634, 0
    %v716 = vsel %vm406, %v635, 0
    %v719 = vsel %vm406, %v636, 0
    %v722 = vsel %vm406, %v637, 0
    %v725 = vsel %vm406, %v638, 0
    %v728 = vsel %vm406, %v639, 0
    %v731 = vsel %vm406, %v640, 0
    %v734 = vsel %vm406, %v641, 0
    %v737 = vsel %vm406, %v642, 0
    %v740 = vsel %vm406, %v643, 0
    %v743 = vsel %vm406, %v644, 0
    %v746 = vsel %vm406, %v645, 0
    %v749 = vsel %vm406, %v646, 0
    %v752 = vsel %vm406, %v647, 0
    %754 = vmatprep.subr.mxu0 0.0
    %755 = vmatpush1.msra.mxu0 %v648
    %756 = vmatprep.subr.mxu0 0.0
    %757 = vmatpush1.msra.mxu0 %v649
    %758 = vmatprep.subr.mxu0 0.0
    %759 = vmatpush1.msra.mxu0 %v650
    %760 = vmatprep.subr.mxu0 0.0
    %761 = vmatpush1.msra.mxu0 %v651
    %762 = vmatprep.subr.mxu0 0.0
    %763 = vmatpush1.msra.mxu0 %v652
    %764 = vmatprep.subr.mxu0 0.0
    %765 = vmatpush1.msra.mxu0 %v653
    %766 = vmatprep.subr.mxu0 0.0
    %767 = vmatpush1.msra.mxu0 %v654
    %768 = vmatprep.subr.mxu0 0.0
    %769 = vmatpush1.msra.mxu0 %v655
    %770 = vmatprep.subr.mxu0 0.0
    %771 = vmatpush1.msra.mxu0 0.0
    %772 = vmatprep.subr.mxu0 0.0
    %773 = vmatpush1.msra.mxu0 0.0
    %774 = vmatprep.subr.mxu0 0.0
    %775 = vmatpush1.msra.mxu0 0.0
    %776 = vmatprep.subr.mxu0 0.0
    %777 = vmatpush1.msra.mxu0 0.0
    %778 = vmatprep.subr.mxu0 0.0
    %779 = vmatpush1.msra.mxu0 0.0
    %780 = vmatprep.subr.mxu0 0.0
    %781 = vmatpush1.msra.mxu0 0.0
    %782 = vmatprep.subr.mxu0 0.0
    %783 = vmatpush1.msra.mxu0 0.0
    %784 = vmatprep.subr.mxu0 0.0
    %785 = vmatpush1.msra.mxu0 0.0
    %786 = vmatprep.subr.mxu0 0.0
    %787 = vmatpush1.msra.mxu0 0.0
    %788 = vmatprep.subr.mxu0 0.0
    %789 = vmatpush1.msra.mxu0 0.0
    %790 = vmatprep.subr.mxu0 0.0
    %791 = vmatpush1.msra.mxu0 0.0
    %792 = vmatprep.subr.mxu0 0.0
    %793 = vmatpush1.msra.mxu0 0.0
    %794 = vmatprep.subr.mxu0 0.0
    %795 = vmatpush1.msra.mxu0 0.0
    %796 = vmatprep.subr.mxu0 0.0
    %797 = vmatpush1.msra.mxu0 0.0
    %798 = vmatprep.subr.mxu0 0.0
    %799 = vmatpush1.msra.mxu0 0.0
    %800 = vmatprep.subr.mxu0 0.0
    %801 = vmatpush1.msra.mxu0 0.0
    %802 = vmatprep.subr.mxu0 0.0
    %803 = vmatpush1.msra.mxu0 0.0
    %804 = vmatprep.subr.mxu0 0.0
    %805 = vmatpush1.msra.mxu0 0.0
    %806 = vmatprep.subr.mxu0 0.0
    %807 = vmatpush1.msra.mxu0 0.0
    %808 = vmatprep.subr.mxu0 0.0
    %809 = vmatpush1.msra.mxu0 0.0
    %810 = vmatprep.subr.mxu0 0.0
    %811 = vmatpush1.msra.mxu0 0.0
    %812 = vmatprep.subr.mxu0 0.0
    %813 = vmatpush1.msra.mxu0 0.0
    %814 = vmatprep.subr.mxu0 0.0
    %815 = vmatpush1.msra.mxu0 0.0
    %816 = vmatprep.subr.mxu0 0.0
    %817 = vmatpush1.msra.mxu0 0.0
    %818 = vmatprep.mubr.f32.mxu0 0.0
    %819 = vmatmul.mubr.f32.gmra.mrb[0].mxu0 %v659
    %v820 = vpop.f32.mrb[0].mxu0
    %v821 = vadd.f32 %v657, %v820
    %v822 = vpop.f32.mrb[0].mxu0
    %823 = vmatprep.mubr.f32.mxu0 0.0
    %824 = vmatmul.mubr.f32.gmra.mrb[0].mxu0 %v662
    %v825 = vpop.f32.mrb[0].mxu0
    %v826 = vadd.f32 %v657, %v825
    %v827 = vpop.f32.mrb[0].mxu0
    %828 = vmatprep.mubr.f32.mxu0 0.0
    %829 = vmatmul.mubr.f32.gmra.mrb[0].mxu0 %v665
    %v830 = vpop.f32.mrb[0].mxu0
    %v831 = vadd.f32 %v657, %v830
    %v832 = vpop.f32.mrb[0].mxu0
    %833 = vmatprep.mubr.f32.mxu0 0.0
    %834 = vmatmul.mubr.f32.gmra.mrb[0].mxu0 %v668
    %v835 = vpop.f32.mrb[0].mxu0
    %v836 = vadd.f32 %v657, %v835
    %v837 = vpop.f32.mrb[0].mxu0
    %838 = vmatprep.mubr.f32.mxu0 0.0
    %839 = vmatmul.mubr.f32.gmra.mrb[0].mxu0 %v671
    %v840 = vpop.f32.mrb[0].mxu0
    %v841 = vadd.f32 %v657, %v840
    %v842 = vpop.f32.mrb[0].mxu0
    %843 = vmatprep.mubr.f32.mxu0 0.0
    %844 = vmatmul.mubr.f32.gmra.mrb[0].mxu0 %v674
    %v845 = vpop.f32.mrb[0].mxu0
    %v846 = vadd.f32 %v657, %v845
    %v847 = vpop.f32.mrb[0].mxu0
    %848 = vmatprep.mubr.f32.mxu0 0.0
    %849 = vmatmul.mubr.f32.gmra.mrb[0].mxu0 %v677
    %v850 = vpop.f32.mrb[0].mxu0
    %v851 = vadd.f32 %v657, %v850
    %v852 = vpop.f32.mrb[0].mxu0
    %853 = vmatprep.mubr.f32.mxu0 0.0
    %854 = vmatmul.mubr.f32.gmra.mrb[0].mxu0 %v680
    %v855 = vpop.f32.mrb[0].mxu0
    %v856 = vadd.f32 %v657, %v855
    %v857 = vpop.f32.mrb[0].mxu0
    %858 = vmatprep.mubr.f32.mxu0 0.0
    %859 = vmatmul.mubr.f32.gmra.mrb[0].mxu0 %v683
    %v860 = vpop.f32.mrb[0].mxu0
    %v861 = vadd.f32 %v657, %v860
    %v862 = vpop.f32.mrb[0].mxu0
    %863 = vmatprep.mubr.f32.mxu0 0.0
    %864 = vmatmul.mubr.f32.gmra.mrb[0].mxu0 %v686
    %v865 = vpop.f32.mrb[0].mxu0
    %v866 = vadd.f32 %v657, %v865
    %v867 = vpop.f32.mrb[0].mxu0
    %868 = vmatprep.mubr.f32.mxu0 0.0
    %869 = vmatmul.mubr.f32.gmra.mrb[0].mxu0 %v689
    %v870 = vpop.f32.mrb[0].mxu0
    %v871 = vadd.f32 %v657, %v870
    %v872 = vpop.f32.mrb[0].mxu0
    %873 = vmatprep.mubr.f32.mxu0 0.0
    %874 = vmatmul.mubr.f32.gmra.mrb[0].mxu0 %v692
    %v875 = vpop.f32.mrb[0].mxu0
    %v876 = vadd.f32 %v657, %v875
    %v877 = vpop.f32.mrb[0].mxu0
    %878 = vmatprep.mubr.f32.mxu0 0.0
    %879 = vmatmul.mubr.f32.gmra.mrb[0].mxu0 %v695
    %v880 = vpop.f32.mrb[0].mxu0
    %v881 = vadd.f32 %v657, %v880
    %v882 = vpop.f32.mrb[0].mxu0
    %883 = vmatprep.mubr.f32.mxu0 0.0
    %884 = vmatmul.mubr.f32.gmra.mrb[0].mxu0 %v698
    %v885 = vpop.f32.mrb[0].mxu0
    %v886 = vadd.f32 %v657, %v885
    %v887 = vpop.f32.mrb[0].mxu0
    %888 = vmatprep.mubr.f32.mxu0 0.0
    %889 = vmatmul.mubr.f32.gmra.mrb[0].mxu0 %v701
    %v890 = vpop.f32.mrb[0].mxu0
    %v891 = vadd.f32 %v657, %v890
    %v892 = vpop.f32.mrb[0].mxu0
    %893 = vmatprep.mubr.f32.mxu0 0.0
    %894 = vmatmul.mubr.f32.gmra.mrb[0].mxu0 %v704
    %v895 = vpop.f32.mrb[0].mxu0
    %v896 = vadd.f32 %v657, %v895
    %v897 = vpop.f32.mrb[0].mxu0
    %898 = vmatprep.mubr.f32.mxu0 0.0
    %899 = vmatmul.mubr.f32.gmra.mrb[0].mxu0 %v707
    %v900 = vpop.f32.mrb[0].mxu0
    %v901 = vadd.f32 %v657, %v900
    %v902 = vpop.f32.mrb[0].mxu0
    %903 = vmatprep.mubr.f32.mxu0 0.0
    %904 = vmatmul.mubr.f32.gmra.mrb[0].mxu0 %v710
    %v905 = vpop.f32.mrb[0].mxu0
    %v906 = vadd.f32 %v657, %v905
    %v907 = vpop.f32.mrb[0].mxu0
    %908 = vmatprep.mubr.f32.mxu0 0.0
    %909 = vmatmul.mubr.f32.gmra.mrb[0].mxu0 %v713
    %v910 = vpop.f32.mrb[0].mxu0
    %v911 = vadd.f32 %v657, %v910
    %v912 = vpop.f32.mrb[0].mxu0
    %913 = vmatprep.mubr.f32.mxu0 0.0
    %914 = vmatmul.mubr.f32.gmra.mrb[0].mxu0 %v716
    %v915 = vpop.f32.mrb[0].mxu0
    %v916 = vadd.f32 %v657, %v915
    %v917 = vpop.f32.mrb[0].mxu0
    %918 = vmatprep.mubr.f32.mxu0 0.0
    %919 = vmatmul.mubr.f32.gmra.mrb[0].mxu0 %v719
    %v920 = vpop.f32.mrb[0].mxu0
    %v921 = vadd.f32 %v657, %v920
    %v922 = vpop.f32.mrb[0].mxu0
    %923 = vmatprep.mubr.f32.mxu0 0.0
    %924 = vmatmul.mubr.f32.gmra.mrb[0].mxu0 %v722
    %v925 = vpop.f32.mrb[0].mxu0
    %v926 = vadd.f32 %v657, %v925
    %v927 = vpop.f32.mrb[0].mxu0
    %928 = vmatprep.mubr.f32.mxu0 0.0
    %929 = vmatmul.mubr.f32.gmra.mrb[0].mxu0 %v725
    %v930 = vpop.f32.mrb[0].mxu0
    %v931 = vadd.f32 %v657, %v930
    %v932 = vpop.f32.mrb[0].mxu0
    %933 = vmatprep.mubr.f32.mxu0 0.0
    %934 = vmatmul.mubr.f32.gmra.mrb[0].mxu0 %v728
    %v935 = vpop.f32.mrb[0].mxu0
    %v936 = vadd.f32 %v657, %v935
    %v937 = vpop.f32.mrb[0].mxu0
    %938 = vmatprep.mubr.f32.mxu0 0.0
    %939 = vmatmul.mubr.f32.gmra.mrb[0].mxu0 %v731
    %v940 = vpop.f32.mrb[0].mxu0
    %v941 = vadd.f32 %v657, %v940
    %v942 = vpop.f32.mrb[0].mxu0
    %943 = vmatprep.mubr.f32.mxu0 0.0
    %944 = vmatmul.mubr.f32.gmra.mrb[0].mxu0 %v734
    %v945 = vpop.f32.mrb[0].mxu0
    %v946 = vadd.f32 %v657, %v945
    %v947 = vpop.f32.mrb[0].mxu0
    %948 = vmatprep.mubr.f32.mxu0 0.0
    %949 = vmatmul.mubr.f32.gmra.mrb[0].mxu0 %v737
    %v950 = vpop.f32.mrb[0].mxu0
    %v951 = vadd.f32 %v657, %v950
    %v952 = vpop.f32.mrb[0].mxu0
    %953 = vmatprep.mubr.f32.mxu0 0.0
    %954 = vmatmul.mubr.f32.gmra.mrb[0].mxu0 %v740
    %v955 = vpop.f32.mrb[0].mxu0
    %v956 = vadd.f32 %v657, %v955
    %v957 = vpop.f32.mrb[0].mxu0
    %958 = vmatprep.mubr.f32.mxu0 0.0
    %959 = vmatmul.mubr.f32.gmra.mrb[0].mxu0 %v743
    %v960 = vpop.f32.mrb[0].mxu0
    %v961 = vadd.f32 %v657, %v960
    %v962 = vpop.f32.mrb[0].mxu0
    %963 = vmatprep.mubr.f32.mxu0 0.0
    %964 = vmatmul.mubr.f32.gmra.mrb[0].mxu0 %v746
    %v965 = vpop.f32.mrb[0].mxu0
    %v966 = vadd.f32 %v657, %v965
    %v967 = vpop.f32.mrb[0].mxu0
    %968 = vmatprep.mubr.f32.mxu0 0.0
    %969 = vmatmul.mubr.f32.gmra.mrb[0].mxu0 %v749
    %v970 = vpop.f32.mrb[0].mxu0
    %v971 = vadd.f32 %v657, %v970
    %v972 = vpop.f32.mrb[0].mxu0
    %973 = vmatprep.mubr.f32.mxu0 0.0
    %974 = vmatmul.mubr.f32.gmra.mrb[0].mxu0 %v752
    %v975 = vpop.f32.mrb[0].mxu0
    %v976 = vadd.f32 %v657, %v975
    %v977 = vpop.f32.mrb[0].mxu0
    %978 = vdwg.mxu0
    %vm979 = vcmask 7168
    %980 = vst.msk [vmem:[#allocation3] sm:$0xff] %vm979, %v821
    %981 = vst.msk [vmem:[#allocation3 + $0x8] sm:$0xff] %vm979, %v826
    %982 = vst.msk [vmem:[#allocation3 + $0x10] sm:$0xff] %vm979, %v831
    %983 = vst.msk [vmem:[#allocation3 + $0x18] sm:$0xff] %vm979, %v836
    %984 = vst.msk [vmem:[#allocation3 + $0x20] sm:$0xff] %vm979, %v841
    %985 = vst.msk [vmem:[#allocation3 + $0x28] sm:$0xff] %vm979, %v846
    %986 = vst.msk [vmem:[#allocation3 + $0x30] sm:$0xff] %vm979, %v851
    %987 = vst.msk [vmem:[#allocation3 + $0x38] sm:$0xff] %vm979, %v856
    %988 = vst.msk [vmem:[#allocation3 + $0x40] sm:$0xff] %vm979, %v861
    %989 = vst.msk [vmem:[#allocation3 + $0x48] sm:$0xff] %vm979, %v866
    %990 = vst.msk [vmem:[#allocation3 + $0x50] sm:$0xff] %vm979, %v871
    %991 = vst.msk [vmem:[#allocation3 + $0x58] sm:$0xff] %vm979, %v876
    %992 = vst.msk [vmem:[#allocation3 + $0x60] sm:$0xff] %vm979, %v881
    %993 = vst.msk [vmem:[#allocation3 + $0x68] sm:$0xff] %vm979, %v886
    %994 = vst.msk [vmem:[#allocation3 + $0x70] sm:$0xff] %vm979, %v891
    %995 = vst.msk [vmem:[#allocation3 + $0x78] sm:$0xff] %vm979, %v896
    %996 = vst.msk [vmem:[#allocation3 + $0x80] sm:$0xff] %vm979, %v901
    %997 = vst.msk [vmem:[#allocation3 + $0x88] sm:$0xff] %vm979, %v906
    %998 = vst.msk [vmem:[#allocation3 + $0x90] sm:$0xff] %vm979, %v911
    %999 = vst.msk [vmem:[#allocation3 + $0x98] sm:$0xff] %vm979, %v916
    %1000 = vst.msk [vmem:[#allocation3 + $0xa0] sm:$0xff] %vm979, %v921
    %1001 = vst.msk [vmem:[#allocation3 + $0xa8] sm:$0xff] %vm979, %v926
    %1002 = vst.msk [vmem:[#allocation3 + $0xb0] sm:$0xff] %vm979, %v931
    %1003 = vst.msk [vmem:[#allocation3 + $0xb8] sm:$0xff] %vm979, %v936
    %1004 = vst.msk [vmem:[#allocation3 + $0xc0] sm:$0xff] %vm979, %v941
    %1005 = vst.msk [vmem:[#allocation3 + $0xc8] sm:$0xff] %vm979, %v946
    %1006 = vst.msk [vmem:[#allocation3 + $0xd0] sm:$0xff] %vm979, %v951
    %1007 = vst.msk [vmem:[#allocation3 + $0xd8] sm:$0xff] %vm979, %v956
    %1008 = vst.msk [vmem:[#allocation3 + $0xe0] sm:$0xff] %vm979, %v961
    %1009 = vst.msk [vmem:[#allocation3 + $0xe8] sm:$0xff] %vm979, %v966
    %1010 = vst.msk [vmem:[#allocation3 + $0xf0] sm:$0xff] %vm979, %v971
    %1011 = vst.msk [vmem:[#allocation3 + $0xf8] sm:$0xff] %vm979, %v976
    // Predicated region
    $region30: #{tpu_custom_call.1} parent=1 // pred_check
      _
    $region31: #{tpu_custom_call.1} parent=1 // pred_check_branch
      %1013 = sbr.rel (0) target = $region33
    $region32: #{tpu_custom_call.1} parent=1 // pred_region
      // Predicated region
      $region34: #{tpu_custom_call.1} parent=32 // pred_check
        _
      $region35: #{tpu_custom_call.1} parent=32 // pred_check_branch
        %1015 = sbr.rel (0) target = $region37
      $region36: #{tpu_custom_call.1} parent=32 // pred_region
        // Predicated region
        $region38: #{tpu_custom_call.1} parent=36 // pred_check
          _
        $region39: #{tpu_custom_call.1} parent=36 // pred_check_branch
          %1017 = sbr.rel (0) target = $region41
        $region40: #{tpu_custom_call.1} parent=36 // pred_region
          // Predicated region
          $region53: #{tpu_custom_call.1} parent=40 // pred_check
            _
          $region54: #{tpu_custom_call.1} parent=40 // pred_check_branch
            %1032 = sbr.rel (0) target = $region56
          $region55: #{tpu_custom_call.1} parent=40 // pred_region
            loop: start=0, step=1, limit=1
            $region57: #{tpu_custom_call.1} parent=55 // loop_pre_header
              _
            $region58: #{tpu_custom_call.1} parent=55 // loop_header
              %s1034 = sphi 0, %s1038
              %p1035 = scmp.ge.s32.totalorder %s1034, 1
              %s1039 = sphi [#allocation3], [#allocation3]
              %s1040 = sphi %s7, %s7
            $region59: #{tpu_custom_call.1} parent=55 // loop_header_branch
              %1037 = sbr.rel (%p1035) target = $region63
            $region60: #{tpu_custom_call.1} parent=55 // loop_body
              %v1041 = vld [vmem:[%s1039] sm:$0xff]
              %1042 = vst [vmem:[%s1040] sm:$0xff] %v1041
            $region61: #{tpu_custom_call.1} parent=55 // loop_footer
              %s1038 = sadd.s32 1, %s1034
            $region62: #{tpu_custom_call.1} parent=55 // loop_footer_branch
              %1033 = sbr.rel target = $region58
            $region63: #{tpu_custom_call.1} parent=55 // loop_exit
              _
          $region56: #{tpu_custom_call.1} parent=40 // pred_fallthru
            _
          // Predicated region
          $region64: #{tpu_custom_call.1} parent=40 // pred_check
            _
          $region65: #{tpu_custom_call.1} parent=40 // pred_check_branch
            %1044 = sbr.rel target = $region67
          $region66: #{tpu_custom_call.1} parent=40 // pred_region
            _
          $region67: #{tpu_custom_call.1} parent=40 // pred_fallthru
            _
        $region41: #{tpu_custom_call.1} parent=36 // pred_fallthru
          _
        // Predicated region
        $region42: #{tpu_custom_call.1} parent=36 // pred_check
          _
        $region43: #{tpu_custom_call.1} parent=36 // pred_check_branch
          %1019 = sbr.rel target = $region45
        $region44: #{tpu_custom_call.1} parent=36 // pred_region
          loop: start=0, step=1, limit=1
          $region46: #{tpu_custom_call.1} parent=44 // loop_pre_header
            _
          $region47: #{tpu_custom_call.1} parent=44 // loop_header
            %s1022 = sphi 0, %s1026
            %p1023 = scmp.ge.s32.totalorder %s1022, 1
            %s1027 = sphi [#allocation3], [#allocation3]
            %s1028 = sphi %s7, %s7
          $region48: #{tpu_custom_call.1} parent=44 // loop_header_branch
            %1025 = sbr.rel (%p1023) target = $region52
          $region49: #{tpu_custom_call.1} parent=44 // loop_body
            %v1029 = vld [vmem:[%s1027] sm:$0xff]
            %1030 = vst [vmem:[%s1028] sm:$0xff] %v1029
          $region50: #{tpu_custom_call.1} parent=44 // loop_footer
            %s1026 = sadd.s32 1, %s1022
          $region51: #{tpu_custom_call.1} parent=44 // loop_footer_branch
            %1021 = sbr.rel target = $region47
          $region52: #{tpu_custom_call.1} parent=44 // loop_exit
            _
        $region45: #{tpu_custom_call.1} parent=36 // pred_fallthru
          _
      $region37: #{tpu_custom_call.1} parent=32 // pred_fallthru
        _
      %1045 = vnop
    $region33: #{tpu_custom_call.1} parent=1 // pred_fallthru
      _
    // Predicated region
    $region68: #{tpu_custom_call.1} parent=1 // pred_check
      _
    $region69: #{tpu_custom_call.1} parent=1 // pred_check_branch
      %1047 = sbr.rel (0) target = $region71
    $region70: #{tpu_custom_call.1} parent=1 // pred_region
      _
    $region71: #{tpu_custom_call.1} parent=1 // pred_fallthru
      _

</llo_original>
